<compile_context>
chip_gen: v7x
topology: tpu7x:2x2x1
jax: 0.10.0
libtpu: 0.0.40
codegen_flags: <defaults>
</compile_context>

<pallas_src>
import numpy as np
import jax
import jax.numpy as jnp
from jax.experimental import pallas as pl
from jax.experimental.pallas import tpu as pltpu

N_QUBITS = 16
N_LAYERS = 3
D_MODEL = 128
_MAX_TILE = 4096   # keeps double-buffered I/O + temps inside every generation's scoped-VMEM budget


def _parity_mask(n_qubits: int, n_layers: int) -> np.ndarray:
    """M[j, k] = 1 iff cos(y_k) is a factor of <Z_j>."""
    P = np.tril(np.ones((n_qubits, n_qubits), dtype=np.int64))  # one sequential CNOT chain (GF(2))
    M = np.eye(n_qubits, dtype=np.int64)
    for _ in range(n_layers):
        M = (M @ P) % 2
    return M.astype(np.float32)


_MASK = _parity_mask(N_QUBITS, N_LAYERS)      # (16, 16) {0,1}: M[j, k]
_MASK_T = np.ascontiguousarray(_MASK.T)       # (16, 16): row k = outputs j touched by input angle k


def quantum_layer_kernel(x_ref, w_in_ref, b_in_ref, w_out_ref, b_out_ref, mask_t_ref, o_ref):
    # x: (TB,128)  w_in: (128,16)  b_in: (1,16)  w_out: (16,128)  b_out: (1,128)  mask_t: (16,16)
    x = x_ref[...].astype(jnp.float32)                     # bf16 inputs upcast immediately (v5e VPU/EUP)
    # input_proj: 128 -> 16  (MXU)
    y = jnp.dot(x, w_in_ref[...], preferred_element_type=jnp.float32) + b_in_ref[...]
    c = jnp.cos(y)                                         # per-qubit <Z> of the post-RY product state
    cm1 = c - 1.0                                          # hoisted; loop body is branch-free

    mask_t = mask_t_ref[...]                               # static 0/1 parity mask (input, not a capture)
    # Exact circuit expectations: masked product of cosines, q_j = prod_k (1 + M[j,k]*(cos(y_k)-1)).
    # n_qubits = 16 -> fully unrolled multiply chain on the VPU (hidden under HBM DMA at these tiles).
    q = jnp.ones_like(c)                                   # (TB, 16)
    for k in range(N_QUBITS):
        q = q * (1.0 + mask_t[k:k + 1, :] * cm1[:, k:k + 1])

    # output_proj: 16 -> 128  (MXU)
    out = jnp.dot(q, w_out_ref[...], preferred_element_type=jnp.float32) + b_out_ref[...]
    o_ref[...] = out.astype(o_ref.dtype)


def _round_up(x: int, m: int) -> int:
    return (x + m - 1) // m * m


def quantum_layer(x, w_in, b_in, w_out, b_out, *, tb=2048):
    """x: (B, 128) -> (B, 128).  Weights stored (in, out); biases (1, out)."""
    B, D = x.shape
    assert D == D_MODEL

    # Tile choice: the op is HBM-bandwidth bound (~8 flop/byte), so use large batch tiles to
    # amortize per-grid-step overhead, while (a) keeping tiles a multiple of 8 sublanes,
    # (b) capping at _MAX_TILE so double-buffered I/O fits scoped VMEM on v5e/v6e/v7x,
    # (c) keeping >= 2 grid steps when the batch allows so v7x's two TensorCores both get work.
    tb = max(8, min(int(tb), _MAX_TILE))
    b_pad = _round_up(B, 8)
    tile = min(tb, b_pad)
    if b_pad > 8 and pl.cdiv(b_pad, tile) < 2:
        tile = max(8, _round_up(pl.cdiv(b_pad, 2), 8))
    b_pad = _round_up(b_pad, tile)

    # Pad the batch instead of requiring B % tile == 0; extra rows are sliced off at the end.
    x_p = x if b_pad == B else jnp.pad(x, ((0, b_pad - B), (0, 0)))
    grid = (b_pad // tile,)

    mask_t = jnp.asarray(_MASK_T)

    itemsize = int(jnp.dtype(x.dtype).itemsize)
    weight_bytes = 4 * (2 * D_MODEL * N_QUBITS + N_QUBITS + D_MODEL + N_QUBITS * N_QUBITS)
    cost = pl.CostEstimate(
        flops=int(4 * b_pad * D_MODEL * N_QUBITS + 3 * b_pad * N_QUBITS * N_QUBITS),
        transcendentals=int(b_pad * N_QUBITS),
        bytes_accessed=int(2 * b_pad * D_MODEL * itemsize + weight_bytes),
    )

    out = pl.pallas_call(
        quantum_layer_kernel,
        out_shape=jax.ShapeDtypeStruct((b_pad, D_MODEL), x.dtype),
        grid=grid,
        in_specs=[
            pl.BlockSpec((tile, D_MODEL), lambda i: (i, 0)),
            # Weights / biases / mask use a constant block index: the pipeline only DMAs them once
            # (their block index never changes), so no explicit single-buffering is needed.
            pl.BlockSpec((D_MODEL, N_QUBITS), lambda i: (0, 0)),
            pl.BlockSpec((1, N_QUBITS), lambda i: (0, 0)),
            pl.BlockSpec((N_QUBITS, D_MODEL), lambda i: (0, 0)),
            pl.BlockSpec((1, D_MODEL), lambda i: (0, 0)),
            pl.BlockSpec((N_QUBITS, N_QUBITS), lambda i: (0, 0)),
        ],
        out_specs=pl.BlockSpec((tile, D_MODEL), lambda i: (i, 0)),
        compiler_params=pltpu.CompilerParams(
            dimension_semantics=("parallel",),      # batch tiles shard across TensorCores (v7x)
            vmem_limit_bytes=32 * 1024 * 1024,      # headroom for tile=4096 under v5e's 16MiB default
        ),
        cost_estimate=cost,
    )(x_p, w_in, b_in, w_out, b_out, mask_t)
    return out[:B]


def quantum_layer_ref(x, w_in, b_in, w_out, b_out):
    """Pure-JAX reference of the same exact closed-form semantics (for validation)."""
    y = x.astype(jnp.float32) @ w_in + b_in
    c = jnp.cos(y)                                        # (B, 16)
    mask = jnp.asarray(_MASK)                             # (16, 16): M[j, k]
    terms = mask[None, :, :] * c[:, None, :] + (1.0 - mask[None, :, :])
    q = jnp.prod(terms, axis=-1)                          # (B, 16)
    return (q @ w_out + b_out).astype(x.dtype)


if __name__ == "__main__":
    key = jax.random.PRNGKey(0)
    k_x, k_wi, k_bi, k_wo, k_bo, k_qw = jax.random.split(key, 6)

    B = 20  # deliberately not a multiple of 8 to exercise the padded last tile + 2-step grid
    x = jax.random.normal(k_x, (B, D_MODEL), dtype=jnp.float32)

    # Deterministic parameter init (shapes from the module's __init__).
    # Stored as (in, out) == transpose of torch.nn.Linear.weight.
    w_in = jax.random.normal(k_wi, (D_MODEL, N_QUBITS), dtype=jnp.float32) * (1.0 / np.sqrt(D_MODEL))
    b_in = jax.random.normal(k_bi, (1, N_QUBITS), dtype=jnp.float32) * 0.01
    w_out = jax.random.normal(k_wo, (N_QUBITS, D_MODEL), dtype=jnp.float32) * (1.0 / np.sqrt(N_QUBITS))
    b_out = jax.random.normal(k_bo, (1, D_MODEL), dtype=jnp.float32) * 0.01
    # RZ weights (n_layers, n_qubits) exist in the module but provably have zero effect on the
    # PauliZ expectation values (diagonal gates + Z-string-preserving CNOTs) -> unused in compute.
    q_weights = jax.random.uniform(k_qw, (N_LAYERS, N_QUBITS), dtype=jnp.float32)  # noqa: F841

    out = quantum_layer(x, w_in, b_in, w_out, b_out)
    out = jax.block_until_ready(out)

    ref = quantum_layer_ref(x, w_in, b_in, w_out, b_out)
    np.testing.assert_allclose(np.asarray(out), np.asarray(ref), rtol=1e-5, atol=1e-5)

    print("KERNEL_OK")
</pallas_src>

<mosaic_0001>
module attributes {stable_mosaic.version = 11 : i64} {
  func.func @quantum_layer_kernel(%arg0: i32, %arg1: memref<16x128xf32, #tpu.memory_space<vmem>>, %arg2: memref<128x16xf32, #tpu.memory_space<vmem>>, %arg3: memref<1x16xf32, #tpu.memory_space<vmem>>, %arg4: memref<16x128xf32, #tpu.memory_space<vmem>>, %arg5: memref<1x128xf32, #tpu.memory_space<vmem>>, %arg6: memref<16x16xf32, #tpu.memory_space<vmem>>, %arg7: memref<16x128xf32, #tpu.memory_space<vmem>>) attributes {dimension_semantics = [#tpu.dimension_semantics<parallel>], iteration_bounds = array<i64: 2>, scalar_prefetch = 0 : i64, scratch_operands = 0 : i64, tpu.core_type = #tpu.core_type<tc>, window_params = [{transform_indices = @transform_0, window_bounds = array<i64: 16, 128>}, {pipeline_mode = #tpu.pipeline_mode<synchronous>, transform_indices = @transform_1, window_bounds = array<i64: 128, 16>}, {pipeline_mode = #tpu.pipeline_mode<synchronous>, transform_indices = @transform_2, window_bounds = array<i64: 1, 16>}, {pipeline_mode = #tpu.pipeline_mode<synchronous>, transform_indices = @transform_3, window_bounds = array<i64: 16, 128>}, {pipeline_mode = #tpu.pipeline_mode<synchronous>, transform_indices = @transform_4, window_bounds = array<i64: 1, 128>}, {pipeline_mode = #tpu.pipeline_mode<synchronous>, transform_indices = @transform_5, window_bounds = array<i64: 16, 16>}, {transform_indices = @transform_6, window_bounds = array<i64: 16, 128>}]} {
    %c0 = arith.constant 0 : index
    %c0_0 = arith.constant 0 : index
    %0 = vector.load %arg1[%c0, %c0_0] : memref<16x128xf32, #tpu.memory_space<vmem>>, vector<16x128xf32>
    %c0_1 = arith.constant 0 : index
    %c0_2 = arith.constant 0 : index
    %1 = vector.load %arg2[%c0_1, %c0_2] : memref<128x16xf32, #tpu.memory_space<vmem>>, vector<128x16xf32>
    %cst = arith.constant dense<0.000000e+00> : vector<16x16xf32>
    %2 = tpu.matmul %0, %1, %cst {dimension_numbers = #tpu.dot_dimension_numbers<[1], [0], [0], [1], [0, 0, 1, 1], [], []>} : vector<16x128xf32>, vector<128x16xf32>, vector<16x16xf32> -> vector<16x16xf32>
    %c0_3 = arith.constant 0 : index
    %c0_4 = arith.constant 0 : index
    %3 = vector.load %arg3[%c0_3, %c0_4] : memref<1x16xf32, #tpu.memory_space<vmem>>, vector<1x16xf32>
    %4 = vector.broadcast %3 : vector<1x16xf32> to vector<16x16xf32>
    %5 = arith.addf %2, %4 : vector<16x16xf32>
    %6 = math.cos %5 : vector<16x16xf32>
    %cst_5 = arith.constant 1.000000e+00 : f32
    %7 = vector.broadcast %cst_5 : f32 to vector<16x16xf32>
    %8 = arith.subf %6, %7 : vector<16x16xf32>
    %c0_6 = arith.constant 0 : index
    %c0_7 = arith.constant 0 : index
    %9 = vector.load %arg6[%c0_6, %c0_7] : memref<16x16xf32, #tpu.memory_space<vmem>>, vector<16x16xf32>
    %cst_8 = arith.constant 1.000000e+00 : f32
    %10 = vector.broadcast %cst_8 : f32 to vector<16x16xf32>
    %11 = vector.extract_strided_slice %9 {offsets = [0, 0], sizes = [1, 16], strides = [1, 1]} : vector<16x16xf32> to vector<1x16xf32>
    %12 = vector.extract_strided_slice %8 {offsets = [0, 0], sizes = [16, 1], strides = [1, 1]} : vector<16x16xf32> to vector<16x1xf32>
    %13 = vector.broadcast %11 : vector<1x16xf32> to vector<16x16xf32>
    %14 = vector.broadcast %12 : vector<16x1xf32> to vector<16x16xf32>
    %15 = arith.mulf %13, %14 : vector<16x16xf32>
    %cst_9 = arith.constant 1.000000e+00 : f32
    %16 = vector.broadcast %cst_9 : f32 to vector<16x16xf32>
    %17 = arith.addf %16, %15 : vector<16x16xf32>
    %18 = arith.mulf %10, %17 : vector<16x16xf32>
    %19 = vector.extract_strided_slice %9 {offsets = [1, 0], sizes = [1, 16], strides = [1, 1]} : vector<16x16xf32> to vector<1x16xf32>
    %20 = vector.extract_strided_slice %8 {offsets = [0, 1], sizes = [16, 1], strides = [1, 1]} : vector<16x16xf32> to vector<16x1xf32>
    %21 = vector.broadcast %19 : vector<1x16xf32> to vector<16x16xf32>
    %22 = vector.broadcast %20 : vector<16x1xf32> to vector<16x16xf32>
    %23 = arith.mulf %21, %22 : vector<16x16xf32>
    %cst_10 = arith.constant 1.000000e+00 : f32
    %24 = vector.broadcast %cst_10 : f32 to vector<16x16xf32>
    %25 = arith.addf %24, %23 : vector<16x16xf32>
    %26 = arith.mulf %18, %25 : vector<16x16xf32>
    %27 = vector.extract_strided_slice %9 {offsets = [2, 0], sizes = [1, 16], strides = [1, 1]} : vector<16x16xf32> to vector<1x16xf32>
    %28 = vector.extract_strided_slice %8 {offsets = [0, 2], sizes = [16, 1], strides = [1, 1]} : vector<16x16xf32> to vector<16x1xf32>
    %29 = vector.broadcast %27 : vector<1x16xf32> to vector<16x16xf32>
    %30 = vector.broadcast %28 : vector<16x1xf32> to vector<16x16xf32>
    %31 = arith.mulf %29, %30 : vector<16x16xf32>
    %cst_11 = arith.constant 1.000000e+00 : f32
    %32 = vector.broadcast %cst_11 : f32 to vector<16x16xf32>
    %33 = arith.addf %32, %31 : vector<16x16xf32>
    %34 = arith.mulf %26, %33 : vector<16x16xf32>
    %35 = vector.extract_strided_slice %9 {offsets = [3, 0], sizes = [1, 16], strides = [1, 1]} : vector<16x16xf32> to vector<1x16xf32>
    %36 = vector.extract_strided_slice %8 {offsets = [0, 3], sizes = [16, 1], strides = [1, 1]} : vector<16x16xf32> to vector<16x1xf32>
    %37 = vector.broadcast %35 : vector<1x16xf32> to vector<16x16xf32>
    %38 = vector.broadcast %36 : vector<16x1xf32> to vector<16x16xf32>
    %39 = arith.mulf %37, %38 : vector<16x16xf32>
    %cst_12 = arith.constant 1.000000e+00 : f32
    %40 = vector.broadcast %cst_12 : f32 to vector<16x16xf32>
    %41 = arith.addf %40, %39 : vector<16x16xf32>
    %42 = arith.mulf %34, %41 : vector<16x16xf32>
    %43 = vector.extract_strided_slice %9 {offsets = [4, 0], sizes = [1, 16], strides = [1, 1]} : vector<16x16xf32> to vector<1x16xf32>
    %44 = vector.extract_strided_slice %8 {offsets = [0, 4], sizes = [16, 1], strides = [1, 1]} : vector<16x16xf32> to vector<16x1xf32>
    %45 = vector.broadcast %43 : vector<1x16xf32> to vector<16x16xf32>
    %46 = vector.broadcast %44 : vector<16x1xf32> to vector<16x16xf32>
    %47 = arith.mulf %45, %46 : vector<16x16xf32>
    %cst_13 = arith.constant 1.000000e+00 : f32
    %48 = vector.broadcast %cst_13 : f32 to vector<16x16xf32>
    %49 = arith.addf %48, %47 : vector<16x16xf32>
    %50 = arith.mulf %42, %49 : vector<16x16xf32>
    %51 = vector.extract_strided_slice %9 {offsets = [5, 0], sizes = [1, 16], strides = [1, 1]} : vector<16x16xf32> to vector<1x16xf32>
    %52 = vector.extract_strided_slice %8 {offsets = [0, 5], sizes = [16, 1], strides = [1, 1]} : vector<16x16xf32> to vector<16x1xf32>
    %53 = vector.broadcast %51 : vector<1x16xf32> to vector<16x16xf32>
    %54 = vector.broadcast %52 : vector<16x1xf32> to vector<16x16xf32>
    %55 = arith.mulf %53, %54 : vector<16x16xf32>
    %cst_14 = arith.constant 1.000000e+00 : f32
    %56 = vector.broadcast %cst_14 : f32 to vector<16x16xf32>
    %57 = arith.addf %56, %55 : vector<16x16xf32>
    %58 = arith.mulf %50, %57 : vector<16x16xf32>
    %59 = vector.extract_strided_slice %9 {offsets = [6, 0], sizes = [1, 16], strides = [1, 1]} : vector<16x16xf32> to vector<1x16xf32>
    %60 = vector.extract_strided_slice %8 {offsets = [0, 6], sizes = [16, 1], strides = [1, 1]} : vector<16x16xf32> to vector<16x1xf32>
    %61 = vector.broadcast %59 : vector<1x16xf32> to vector<16x16xf32>
    %62 = vector.broadcast %60 : vector<16x1xf32> to vector<16x16xf32>
    %63 = arith.mulf %61, %62 : vector<16x16xf32>
    %cst_15 = arith.constant 1.000000e+00 : f32
    %64 = vector.broadcast %cst_15 : f32 to vector<16x16xf32>
    %65 = arith.addf %64, %63 : vector<16x16xf32>
    %66 = arith.mulf %58, %65 : vector<16x16xf32>
    %67 = vector.extract_strided_slice %9 {offsets = [7, 0], sizes = [1, 16], strides = [1, 1]} : vector<16x16xf32> to vector<1x16xf32>
    %68 = vector.extract_strided_slice %8 {offsets = [0, 7], sizes = [16, 1], strides = [1, 1]} : vector<16x16xf32> to vector<16x1xf32>
    %69 = vector.broadcast %67 : vector<1x16xf32> to vector<16x16xf32>
    %70 = vector.broadcast %68 : vector<16x1xf32> to vector<16x16xf32>
    %71 = arith.mulf %69, %70 : vector<16x16xf32>
    %cst_16 = arith.constant 1.000000e+00 : f32
    %72 = vector.broadcast %cst_16 : f32 to vector<16x16xf32>
    %73 = arith.addf %72, %71 : vector<16x16xf32>
    %74 = arith.mulf %66, %73 : vector<16x16xf32>
    %75 = vector.extract_strided_slice %9 {offsets = [8, 0], sizes = [1, 16], strides = [1, 1]} : vector<16x16xf32> to vector<1x16xf32>
    %76 = vector.extract_strided_slice %8 {offsets = [0, 8], sizes = [16, 1], strides = [1, 1]} : vector<16x16xf32> to vector<16x1xf32>
    %77 = vector.broadcast %75 : vector<1x16xf32> to vector<16x16xf32>
    %78 = vector.broadcast %76 : vector<16x1xf32> to vector<16x16xf32>
    %79 = arith.mulf %77, %78 : vector<16x16xf32>
    %cst_17 = arith.constant 1.000000e+00 : f32
    %80 = vector.broadcast %cst_17 : f32 to vector<16x16xf32>
    %81 = arith.addf %80, %79 : vector<16x16xf32>
    %82 = arith.mulf %74, %81 : vector<16x16xf32>
    %83 = vector.extract_strided_slice %9 {offsets = [9, 0], sizes = [1, 16], strides = [1, 1]} : vector<16x16xf32> to vector<1x16xf32>
    %84 = vector.extract_strided_slice %8 {offsets = [0, 9], sizes = [16, 1], strides = [1, 1]} : vector<16x16xf32> to vector<16x1xf32>
    %85 = vector.broadcast %83 : vector<1x16xf32> to vector<16x16xf32>
    %86 = vector.broadcast %84 : vector<16x1xf32> to vector<16x16xf32>
    %87 = arith.mulf %85, %86 : vector<16x16xf32>
    %cst_18 = arith.constant 1.000000e+00 : f32
    %88 = vector.broadcast %cst_18 : f32 to vector<16x16xf32>
    %89 = arith.addf %88, %87 : vector<16x16xf32>
    %90 = arith.mulf %82, %89 : vector<16x16xf32>
    %91 = vector.extract_strided_slice %9 {offsets = [10, 0], sizes = [1, 16], strides = [1, 1]} : vector<16x16xf32> to vector<1x16xf32>
    %92 = vector.extract_strided_slice %8 {offsets = [0, 10], sizes = [16, 1], strides = [1, 1]} : vector<16x16xf32> to vector<16x1xf32>
    %93 = vector.broadcast %91 : vector<1x16xf32> to vector<16x16xf32>
    %94 = vector.broadcast %92 : vector<16x1xf32> to vector<16x16xf32>
    %95 = arith.mulf %93, %94 : vector<16x16xf32>
    %cst_19 = arith.constant 1.000000e+00 : f32
    %96 = vector.broadcast %cst_19 : f32 to vector<16x16xf32>
    %97 = arith.addf %96, %95 : vector<16x16xf32>
    %98 = arith.mulf %90, %97 : vector<16x16xf32>
    %99 = vector.extract_strided_slice %9 {offsets = [11, 0], sizes = [1, 16], strides = [1, 1]} : vector<16x16xf32> to vector<1x16xf32>
    %100 = vector.extract_strided_slice %8 {offsets = [0, 11], sizes = [16, 1], strides = [1, 1]} : vector<16x16xf32> to vector<16x1xf32>
    %101 = vector.broadcast %99 : vector<1x16xf32> to vector<16x16xf32>
    %102 = vector.broadcast %100 : vector<16x1xf32> to vector<16x16xf32>
    %103 = arith.mulf %101, %102 : vector<16x16xf32>
    %cst_20 = arith.constant 1.000000e+00 : f32
    %104 = vector.broadcast %cst_20 : f32 to vector<16x16xf32>
    %105 = arith.addf %104, %103 : vector<16x16xf32>
    %106 = arith.mulf %98, %105 : vector<16x16xf32>
    %107 = vector.extract_strided_slice %9 {offsets = [12, 0], sizes = [1, 16], strides = [1, 1]} : vector<16x16xf32> to vector<1x16xf32>
    %108 = vector.extract_strided_slice %8 {offsets = [0, 12], sizes = [16, 1], strides = [1, 1]} : vector<16x16xf32> to vector<16x1xf32>
    %109 = vector.broadcast %107 : vector<1x16xf32> to vector<16x16xf32>
    %110 = vector.broadcast %108 : vector<16x1xf32> to vector<16x16xf32>
    %111 = arith.mulf %109, %110 : vector<16x16xf32>
    %cst_21 = arith.constant 1.000000e+00 : f32
    %112 = vector.broadcast %cst_21 : f32 to vector<16x16xf32>
    %113 = arith.addf %112, %111 : vector<16x16xf32>
    %114 = arith.mulf %106, %113 : vector<16x16xf32>
    %115 = vector.extract_strided_slice %9 {offsets = [13, 0], sizes = [1, 16], strides = [1, 1]} : vector<16x16xf32> to vector<1x16xf32>
    %116 = vector.extract_strided_slice %8 {offsets = [0, 13], sizes = [16, 1], strides = [1, 1]} : vector<16x16xf32> to vector<16x1xf32>
    %117 = vector.broadcast %115 : vector<1x16xf32> to vector<16x16xf32>
    %118 = vector.broadcast %116 : vector<16x1xf32> to vector<16x16xf32>
    %119 = arith.mulf %117, %118 : vector<16x16xf32>
    %cst_22 = arith.constant 1.000000e+00 : f32
    %120 = vector.broadcast %cst_22 : f32 to vector<16x16xf32>
    %121 = arith.addf %120, %119 : vector<16x16xf32>
    %122 = arith.mulf %114, %121 : vector<16x16xf32>
    %123 = vector.extract_strided_slice %9 {offsets = [14, 0], sizes = [1, 16], strides = [1, 1]} : vector<16x16xf32> to vector<1x16xf32>
    %124 = vector.extract_strided_slice %8 {offsets = [0, 14], sizes = [16, 1], strides = [1, 1]} : vector<16x16xf32> to vector<16x1xf32>
    %125 = vector.broadcast %123 : vector<1x16xf32> to vector<16x16xf32>
    %126 = vector.broadcast %124 : vector<16x1xf32> to vector<16x16xf32>
    %127 = arith.mulf %125, %126 : vector<16x16xf32>
    %cst_23 = arith.constant 1.000000e+00 : f32
    %128 = vector.broadcast %cst_23 : f32 to vector<16x16xf32>
    %129 = arith.addf %128, %127 : vector<16x16xf32>
    %130 = arith.mulf %122, %129 : vector<16x16xf32>
    %131 = vector.extract_strided_slice %9 {offsets = [15, 0], sizes = [1, 16], strides = [1, 1]} : vector<16x16xf32> to vector<1x16xf32>
    %132 = vector.extract_strided_slice %8 {offsets = [0, 15], sizes = [16, 1], strides = [1, 1]} : vector<16x16xf32> to vector<16x1xf32>
    %133 = vector.broadcast %131 : vector<1x16xf32> to vector<16x16xf32>
    %134 = vector.broadcast %132 : vector<16x1xf32> to vector<16x16xf32>
    %135 = arith.mulf %133, %134 : vector<16x16xf32>
    %cst_24 = arith.constant 1.000000e+00 : f32
    %136 = vector.broadcast %cst_24 : f32 to vector<16x16xf32>
    %137 = arith.addf %136, %135 : vector<16x16xf32>
    %138 = arith.mulf %130, %137 : vector<16x16xf32>
    %c0_25 = arith.constant 0 : index
    %c0_26 = arith.constant 0 : index
    %139 = vector.load %arg4[%c0_25, %c0_26] : memref<16x128xf32, #tpu.memory_space<vmem>>, vector<16x128xf32>
    %cst_27 = arith.constant dense<0.000000e+00> : vector<16x128xf32>
    %140 = tpu.matmul %138, %139, %cst_27 {dimension_numbers = #tpu.dot_dimension_numbers<[1], [0], [0], [1], [0, 0, 1, 1], [], []>} : vector<16x16xf32>, vector<16x128xf32>, vector<16x128xf32> -> vector<16x128xf32>
    %c0_28 = arith.constant 0 : index
    %c0_29 = arith.constant 0 : index
    %141 = vector.load %arg5[%c0_28, %c0_29] : memref<1x128xf32, #tpu.memory_space<vmem>>, vector<1x128xf32>
    %142 = vector.broadcast %141 : vector<1x128xf32> to vector<16x128xf32>
    %143 = arith.addf %140, %142 : vector<16x128xf32>
    %c0_30 = arith.constant 0 : index
    %c0_31 = arith.constant 0 : index
    %144 = vector.load %arg7[%c0_30, %c0_31] : memref<16x128xf32, #tpu.memory_space<vmem>>, vector<16x128xf32>
    tpu.vector_store %arg7[%c0_30, %c0_31], %143 {strides = array<i32>} : memref<16x128xf32, #tpu.memory_space<vmem>>, vector<16x128xf32>,
    return
  }
  func.func @transform_0(%arg0: i32) -> (i32, i32) {
    %c0_i32 = arith.constant 0 : i32
    %c0_i32_0 = arith.constant 0 : i32
    return %arg0, %c0_i32 : i32, i32
  }
  func.func @transform_1(%arg0: i32) -> (i32, i32) {
    %c0_i32 = arith.constant 0 : i32
    %c0_i32_0 = arith.constant 0 : i32
    %c0_i32_1 = arith.constant 0 : i32
    return %c0_i32, %c0_i32_0 : i32, i32
  }
  func.func @transform_2(%arg0: i32) -> (i32, i32) {
    %c0_i32 = arith.constant 0 : i32
    %c0_i32_0 = arith.constant 0 : i32
    %c0_i32_1 = arith.constant 0 : i32
    return %c0_i32, %c0_i32_0 : i32, i32
  }
  func.func @transform_3(%arg0: i32) -> (i32, i32) {
    %c0_i32 = arith.constant 0 : i32
    %c0_i32_0 = arith.constant 0 : i32
    %c0_i32_1 = arith.constant 0 : i32
    return %c0_i32, %c0_i32_0 : i32, i32
  }
  func.func @transform_4(%arg0: i32) -> (i32, i32) {
    %c0_i32 = arith.constant 0 : i32
    %c0_i32_0 = arith.constant 0 : i32
    %c0_i32_1 = arith.constant 0 : i32
    return %c0_i32, %c0_i32_0 : i32, i32
  }
  func.func @transform_5(%arg0: i32) -> (i32, i32) {
    %c0_i32 = arith.constant 0 : i32
    %c0_i32_0 = arith.constant 0 : i32
    %c0_i32_1 = arith.constant 0 : i32
    return %c0_i32, %c0_i32_0 : i32, i32
  }
  func.func @transform_6(%arg0: i32) -> (i32, i32) {
    %c0_i32 = arith.constant 0 : i32
    %c0_i32_0 = arith.constant 0 : i32
    return %arg0, %c0_i32 : i32, i32
  }
}

</mosaic_0001>

<llo_original>
// kernel: tpu_custom_call.1
$region0: #{tpu_custom_call.1}
  #allocation0 [shape = 'u32[]', space=smem, size = 0x4, offset = 0x4, fixed_abs, tag = 'smem constant byte address 0x4 - core index']
  #allocation1 [shape = 'u32[144,128]{1,0:T(1,128)}', space=vmem, size = 0x12000, scoped, tag = 'internal scratch']
  %s0 = inlined_call_operand.vmem [shape: f32[32,128], index: 0, kind: input, shape index: {}]
  %s1 = inlined_call_operand.vmem [shape: f32[128,16], index: 1, kind: input, shape index: {}]
  %s2 = inlined_call_operand.vmem [shape: f32[1,16], index: 2, kind: input, shape index: {}]
  %s3 = inlined_call_operand.vmem [shape: f32[16,128], index: 3, kind: input, shape index: {}]
  %s4 = inlined_call_operand.vmem [shape: f32[1,128], index: 4, kind: input, shape index: {}]
  %s5 = inlined_call_operand.vmem [shape: f32[16,16], index: 5, kind: input, shape index: {}]
  %s6 = inlined_call_operand.hbm [shape: f32[32,128], index: 6, kind: output, shape index: {}]
  %s7 = sld [smem:[#allocation0]]
  $region57: #{tpu_custom_call.1} parent=0
    _
  %s9 = ssub.s32 1, %s7
  %s10 = scalar_select 0, %s9, %s7
  $region1: #{tpu_custom_call.1} parent=0
    #allocation2 [shape = 'u8[16384]{0}', space=vmem, size = 0x4000, scoped, tag = 'output window, operand 0']
    #allocation3 [shape = 's32[2]{0}', space=sflag, size = 0x8, scoped, tag = 'scoped memory for tpu_custom_call.1']
    %11 = vsyncpa [#allocation3], 0
    %s12 = scalar_lea.sflag [#allocation3], 1
    %13 = vsyncpa %s12, 0
    loop: start=0, step=1, limit=4
    $region2: #{tpu_custom_call.1} parent=1 // loop_pre_header
      _
    $region3: #{tpu_custom_call.1} parent=1 // loop_header
      %s15 = sphi 0, %s19
      %p16 = scmp.ge.s32.totalorder %s15, 4
      %s25 = sphi 0, %s27
      %s28 = sphi 0, %s25
      %s29 = sphi 0, %s28
      %s45 = sphi 0, %s29
      %s49 = sphi 0, %s49
      %s51 = sphi 0, %s49
      %s52 = sphi 0, %s51
      %s66 = sphi 0, %s52
      %s70 = sphi 0, %s70
      %s72 = sphi 0, %s70
      %s73 = sphi 0, %s72
      %s87 = sphi 0, %s73
      %s91 = sphi 0, %s91
      %s93 = sphi 0, %s91
      %s94 = sphi 0, %s93
      %s108 = sphi 0, %s94
      %s112 = sphi 0, %s112
      %s114 = sphi 0, %s112
      %s115 = sphi 0, %s114
      %s129 = sphi 0, %s115
      %s133 = sphi 0, %s133
      %s135 = sphi 0, %s133
      %s136 = sphi 0, %s135
      %s150 = sphi 0, %s136
      %s156 = sphi 0, %s158
      %s159 = sphi 0, %s156
      %s160 = sphi 0, %s159
      %s176 = sphi 0, %s160
    $region4: #{tpu_custom_call.1} parent=1 // loop_header_branch
      %18 = sbr.rel (%p16) target = $region8
    $region5: #{tpu_custom_call.1} parent=1 // loop_body
      %s20 = ssub.s32 %s15, 1
      %s21 = ssub.s32 %s15, 2
      %s22 = sadd.s32 %s15, 1
      %s23 = ssub.s32 %s15, %s22
      %p24 = scmp.eq.s32.totalorder %s23, 0
      %s26 = sadd.s32 %s25, 1
      %s27 = scalar_select %p24, %s25, %s26
      %p30 = pneg %p24
      %p31 = scmp.eq.s32.totalorder %s15, 1
      %p32 = por %p30, %p31
      %p33 = scmp.ne.s32.totalorder %s25, %s28
      %p34 = scmp.eq.s32.totalorder %s15, 0
      %p35 = por %p33, %p34
      %p36 = scmp.ne.s32.totalorder %s25, %s28
      %p37 = scmp.eq.s32.totalorder %s20, 1
      %p38 = por %p36, %p37
      %p39 = scmp.ne.s32.totalorder %s28, %s29
      %p40 = scmp.eq.s32.totalorder %s20, 0
      %p41 = por %p39, %p40
      %p42 = scmp.ne.s32.totalorder %s28, %s29
      %p43 = scmp.eq.s32.totalorder %s21, 1
      %p44 = por %p42, %p43
      %p46 = scmp.ne.s32.totalorder %s29, %s45
      %p47 = scmp.eq.s32.totalorder %s21, 0
      %p48 = por %p46, %p47
      %s50 = sadd.s32 %s49, 1
      %p53 = scmp.eq.s32.totalorder %s15, 1
      %p54 = scmp.ne.s32.totalorder %s49, %s51
      %p55 = scmp.eq.s32.totalorder %s15, 0
      %p56 = por %p54, %p55
      %p57 = scmp.ne.s32.totalorder %s49, %s51
      %p58 = scmp.eq.s32.totalorder %s20, 1
      %p59 = por %p57, %p58
      %p60 = scmp.ne.s32.totalorder %s51, %s52
      %p61 = scmp.eq.s32.totalorder %s20, 0
      %p62 = por %p60, %p61
      %p63 = scmp.ne.s32.totalorder %s51, %s52
      %p64 = scmp.eq.s32.totalorder %s21, 1
      %p65 = por %p63, %p64
      %p67 = scmp.ne.s32.totalorder %s52, %s66
      %p68 = scmp.eq.s32.totalorder %s21, 0
      %p69 = por %p67, %p68
      %s71 = sadd.s32 %s70, 1
      %p74 = scmp.eq.s32.totalorder %s15, 1
      %p75 = scmp.ne.s32.totalorder %s70, %s72
      %p76 = scmp.eq.s32.totalorder %s15, 0
      %p77 = por %p75, %p76
      %p78 = scmp.ne.s32.totalorder %s70, %s72
      %p79 = scmp.eq.s32.totalorder %s20, 1
      %p80 = por %p78, %p79
      %p81 = scmp.ne.s32.totalorder %s72, %s73
      %p82 = scmp.eq.s32.totalorder %s20, 0
      %p83 = por %p81, %p82
      %p84 = scmp.ne.s32.totalorder %s72, %s73
      %p85 = scmp.eq.s32.totalorder %s21, 1
      %p86 = por %p84, %p85
      %p88 = scmp.ne.s32.totalorder %s73, %s87
      %p89 = scmp.eq.s32.totalorder %s21, 0
      %p90 = por %p88, %p89
      %s92 = sadd.s32 %s91, 1
      %p95 = scmp.eq.s32.totalorder %s15, 1
      %p96 = scmp.ne.s32.totalorder %s91, %s93
      %p97 = scmp.eq.s32.totalorder %s15, 0
      %p98 = por %p96, %p97
      %p99 = scmp.ne.s32.totalorder %s91, %s93
      %p100 = scmp.eq.s32.totalorder %s20, 1
      %p101 = por %p99, %p100
      %p102 = scmp.ne.s32.totalorder %s93, %s94
      %p103 = scmp.eq.s32.totalorder %s20, 0
      %p104 = por %p102, %p103
      %p105 = scmp.ne.s32.totalorder %s93, %s94
      %p106 = scmp.eq.s32.totalorder %s21, 1
      %p107 = por %p105, %p106
      %p109 = scmp.ne.s32.totalorder %s94, %s108
      %p110 = scmp.eq.s32.totalorder %s21, 0
      %p111 = por %p109, %p110
      %s113 = sadd.s32 %s112, 1
      %p116 = scmp.eq.s32.totalorder %s15, 1
      %p117 = scmp.ne.s32.totalorder %s112, %s114
      %p118 = scmp.eq.s32.totalorder %s15, 0
      %p119 = por %p117, %p118
      %p120 = scmp.ne.s32.totalorder %s112, %s114
      %p121 = scmp.eq.s32.totalorder %s20, 1
      %p122 = por %p120, %p121
      %p123 = scmp.ne.s32.totalorder %s114, %s115
      %p124 = scmp.eq.s32.totalorder %s20, 0
      %p125 = por %p123, %p124
      %p126 = scmp.ne.s32.totalorder %s114, %s115
      %p127 = scmp.eq.s32.totalorder %s21, 1
      %p128 = por %p126, %p127
      %p130 = scmp.ne.s32.totalorder %s115, %s129
      %p131 = scmp.eq.s32.totalorder %s21, 0
      %p132 = por %p130, %p131
      %s134 = sadd.s32 %s133, 1
      %p137 = scmp.eq.s32.totalorder %s15, 1
      %p138 = scmp.ne.s32.totalorder %s133, %s135
      %p139 = scmp.eq.s32.totalorder %s15, 0
      %p140 = por %p138, %p139
      %p141 = scmp.ne.s32.totalorder %s133, %s135
      %p142 = scmp.eq.s32.totalorder %s20, 1
      %p143 = por %p141, %p142
      %p144 = scmp.ne.s32.totalorder %s135, %s136
      %p145 = scmp.eq.s32.totalorder %s20, 0
      %p146 = por %p144, %p145
      %p147 = scmp.ne.s32.totalorder %s135, %s136
      %p148 = scmp.eq.s32.totalorder %s21, 1
      %p149 = por %p147, %p148
      %p151 = scmp.ne.s32.totalorder %s136, %s150
      %p152 = scmp.eq.s32.totalorder %s21, 0
      %p153 = por %p151, %p152
      %s154 = ssub.s32 %s15, %s22
      %p155 = scmp.eq.s32.totalorder %s154, 0
      %s157 = sadd.s32 %s156, 1
      %s158 = scalar_select %p155, %s156, %s157
      %p161 = pneg %p155
      %p162 = scmp.eq.s32.totalorder %s15, 1
      %p163 = por %p161, %p162
      %p164 = scmp.ne.s32.totalorder %s156, %s159
      %p165 = scmp.eq.s32.totalorder %s15, 0
      %p166 = por %p164, %p165
      %p167 = scmp.ne.s32.totalorder %s156, %s159
      %p168 = scmp.eq.s32.totalorder %s20, 1
      %p169 = por %p167, %p168
      %p170 = scmp.ne.s32.totalorder %s159, %s160
      %p171 = scmp.eq.s32.totalorder %s20, 0
      %p172 = por %p170, %p171
      %p173 = scmp.ne.s32.totalorder %s159, %s160
      %p174 = scmp.eq.s32.totalorder %s21, 1
      %p175 = por %p173, %p174
      %p177 = scmp.ne.s32.totalorder %s160, %s176
      %p178 = scmp.eq.s32.totalorder %s21, 0
      %p179 = por %p177, %p178
      %p180 = scmp.le.s32.totalorder 1, %s15
      %p181 = scmp.lt.s32.totalorder %s15, 3
      %p182 = pnand %p180, %p181
      %p183 = pneg %p182
      // Predicated region
      $region9: #{tpu_custom_call.1} parent=5 // pred_check
        _
      $region10: #{tpu_custom_call.1} parent=5 // pred_check_branch
        %185 = sbr.rel (%p182) target = $region12
      $region11: #{tpu_custom_call.1} parent=5 // pred_region
        %s186 = ssub.s32 %s15, 1
        // Predicated region
        $region13: #{tpu_custom_call.1} parent=11 // pred_check
          %p187 = pneg %p62
        $region14: #{tpu_custom_call.1} parent=11 // pred_check_branch
          %189 = sbr.rel (%p187) target = $region16
        $region15: #{tpu_custom_call.1} parent=11 // pred_region
          _
        $region16: #{tpu_custom_call.1} parent=11 // pred_fallthru
          _
        // Predicated region
        $region17: #{tpu_custom_call.1} parent=11 // pred_check
          %p190 = pneg %p83
        $region18: #{tpu_custom_call.1} parent=11 // pred_check_branch
          %192 = sbr.rel (%p190) target = $region20
        $region19: #{tpu_custom_call.1} parent=11 // pred_region
          _
        $region20: #{tpu_custom_call.1} parent=11 // pred_fallthru
          _
        // Predicated region
        $region21: #{tpu_custom_call.1} parent=11 // pred_check
          %p193 = pneg %p104
        $region22: #{tpu_custom_call.1} parent=11 // pred_check_branch
          %195 = sbr.rel (%p193) target = $region24
        $region23: #{tpu_custom_call.1} parent=11 // pred_region
          _
        $region24: #{tpu_custom_call.1} parent=11 // pred_fallthru
          _
        // Predicated region
        $region25: #{tpu_custom_call.1} parent=11 // pred_check
          %p196 = pneg %p125
        $region26: #{tpu_custom_call.1} parent=11 // pred_check_branch
          %198 = sbr.rel (%p196) target = $region28
        $region27: #{tpu_custom_call.1} parent=11 // pred_region
          _
        $region28: #{tpu_custom_call.1} parent=11 // pred_fallthru
          _
        // Predicated region
        $region29: #{tpu_custom_call.1} parent=11 // pred_check
          %p199 = pneg %p146
        $region30: #{tpu_custom_call.1} parent=11 // pred_check_branch
          %201 = sbr.rel (%p199) target = $region32
        $region31: #{tpu_custom_call.1} parent=11 // pred_region
          _
        $region32: #{tpu_custom_call.1} parent=11 // pred_fallthru
          _
      $region12: #{tpu_custom_call.1} parent=5 // pred_fallthru
        _
      %p202 = scmp.lt.s32.totalorder %s15, 2
      // Predicated region
      $region33: #{tpu_custom_call.1} parent=5 // pred_check
        %p203 = pneg %p202
      $region34: #{tpu_custom_call.1} parent=5 // pred_check_branch
        %205 = sbr.rel (%p203) target = $region36
      $region35: #{tpu_custom_call.1} parent=5 // pred_region
        // Predicated region
        $region37: #{tpu_custom_call.1} parent=35 // pred_check
          %p206 = pneg %p35
        $region38: #{tpu_custom_call.1} parent=35 // pred_check_branch
          %208 = sbr.rel (%p206) target = $region40
        $region39: #{tpu_custom_call.1} parent=35 // pred_region
          %s209 = smul.u32 2, %s15
          %p210 = scmp.lt.s32.totalorder %s209, 3
          %s211 = scalar_select %p210, %s209, 3
          %s212 = smul.addr %s211, 8
          %s213 = scalar_lea.vmem %s0, %s212
          %s214 = smul.u32 2, %s15
        $region40: #{tpu_custom_call.1} parent=35 // pred_fallthru
          _
      $region36: #{tpu_custom_call.1} parent=5 // pred_fallthru
        _
      %p215 = scmp.le.s32.totalorder 1, %s15
      %p216 = scmp.lt.s32.totalorder %s15, 3
      %p217 = pnand %p215, %p216
      %p218 = pneg %p217
      // Predicated region
      $region41: #{tpu_custom_call.1} parent=5 // pred_check
        _
      $region42: #{tpu_custom_call.1} parent=5 // pred_check_branch
        %220 = sbr.rel (%p217) target = $region44
      $region43: #{tpu_custom_call.1} parent=5 // pred_region
        %s221 = ssub.s32 %s15, 1
        %s222 = smul.u32 2, %s20
        %p223 = scmp.lt.s32.totalorder %s222, 3
        %s224 = scalar_select %p223, %s222, 3
        %s225 = smul.addr %s224, 8
        %s226 = scalar_lea.vmem %s0, %s225
        %p227 = pneg %p41
        %p228 = pneg %p38
        %p229 = pneg %p62
        %p230 = pneg %p59
        %p231 = pneg %p83
        %p232 = pneg %p80
        %p233 = pneg %p104
        %p234 = pneg %p101
        %p235 = pneg %p125
        %p236 = pneg %p122
        %p237 = pneg %p146
        %p238 = pneg %p143
        %p239 = pneg %p172
        %p240 = pneg %p169
        %s241 = sand.u32 %s159, 1
        %s242 = scalar_lea.sflag [#allocation3], %s241
        %s243 = sand.u32 %s159, 1
        %s244 = smul.addr %s243, 16
        %s245 = scalar_lea.vmem [#allocation2], %s244
        %s246 = smul.u32 2, %s20
        %p247 = scmp.lt.s32.totalorder %s246, 3
        %s248 = scalar_select %p247, %s246, 3
        %s249 = smul.addr %s248, 8
        %s250 = scalar_lea.vmem %s0, %s249
        %s251 = smul.u32 2, %s20
        %s252 = smul.u32 2, %s20
        %v253 = vld [vmem:[%s250] sm:$0xff]
        %v254 = vld [vmem:[%s250 + $0x8] sm:$0xff]
        %v255 = vld [vmem:[%s1] sm:$0xff]
        %v256 = vld [vmem:[%s1 + $0x8] sm:$0xff]
        %v257 = vld [vmem:[%s1 + $0x10] sm:$0xff]
        %v258 = vld [vmem:[%s1 + $0x18] sm:$0xff]
        %v259 = vld [vmem:[%s1 + $0x20] sm:$0xff]
        %v260 = vld [vmem:[%s1 + $0x28] sm:$0xff]
        %v261 = vld [vmem:[%s1 + $0x30] sm:$0xff]
        %v262 = vld [vmem:[%s1 + $0x38] sm:$0xff]
        %v263 = vld [vmem:[%s1 + $0x40] sm:$0xff]
        %v264 = vld [vmem:[%s1 + $0x48] sm:$0xff]
        %v265 = vld [vmem:[%s1 + $0x50] sm:$0xff]
        %v266 = vld [vmem:[%s1 + $0x58] sm:$0xff]
        %v267 = vld [vmem:[%s1 + $0x60] sm:$0xff]
        %v268 = vld [vmem:[%s1 + $0x68] sm:$0xff]
        %v269 = vld [vmem:[%s1 + $0x70] sm:$0xff]
        %v270 = vld [vmem:[%s1 + $0x78] sm:$0xff]
        %v271 = vld [vmem:[%s2] sm:$0x1]
        %v273 = vlaneseq
        %v274 = vshrl.u32 %v273, 7
        %v275 = vsub.s32 0, %v274
        %v276 = vrot.slane %v271, %v275
        %278 = vmatprep.subr.mxu0 0.0
        %279 = vmatpush1.msra.mxu0 %v255
        %280 = vmatprep.subr.mxu0 0.0
        %281 = vmatpush1.msra.mxu0 %v256
        %282 = vmatprep.subr.mxu0 0.0
        %283 = vmatpush1.msra.mxu0 %v257
        %284 = vmatprep.subr.mxu0 0.0
        %285 = vmatpush1.msra.mxu0 %v258
        %286 = vmatprep.subr.mxu0 0.0
        %287 = vmatpush1.msra.mxu0 %v259
        %288 = vmatprep.subr.mxu0 0.0
        %289 = vmatpush1.msra.mxu0 %v260
        %290 = vmatprep.subr.mxu0 0.0
        %291 = vmatpush1.msra.mxu0 %v261
        %292 = vmatprep.subr.mxu0 0.0
        %293 = vmatpush1.msra.mxu0 %v262
        %294 = vmatprep.subr.mxu0 0.0
        %295 = vmatpush1.msra.mxu0 %v263
        %296 = vmatprep.subr.mxu0 0.0
        %297 = vmatpush1.msra.mxu0 %v264
        %298 = vmatprep.subr.mxu0 0.0
        %299 = vmatpush1.msra.mxu0 %v265
        %300 = vmatprep.subr.mxu0 0.0
        %301 = vmatpush1.msra.mxu0 %v266
        %302 = vmatprep.subr.mxu0 0.0
        %303 = vmatpush1.msra.mxu0 %v267
        %304 = vmatprep.subr.mxu0 0.0
        %305 = vmatpush1.msra.mxu0 %v268
        %306 = vmatprep.subr.mxu0 0.0
        %307 = vmatpush1.msra.mxu0 %v269
        %308 = vmatprep.subr.mxu0 0.0
        %309 = vmatpush1.msra.mxu0 %v270
        %310 = vmatprep.subr.mxu0 0.0
        %311 = vmatpush1.msra.mxu0 0.0
        %312 = vmatprep.subr.mxu0 0.0
        %313 = vmatpush1.msra.mxu0 0.0
        %314 = vmatprep.subr.mxu0 0.0
        %315 = vmatpush1.msra.mxu0 0.0
        %316 = vmatprep.subr.mxu0 0.0
        %317 = vmatpush1.msra.mxu0 0.0
        %318 = vmatprep.subr.mxu0 0.0
        %319 = vmatpush1.msra.mxu0 0.0
        %320 = vmatprep.subr.mxu0 0.0
        %321 = vmatpush1.msra.mxu0 0.0
        %322 = vmatprep.subr.mxu0 0.0
        %323 = vmatpush1.msra.mxu0 0.0
        %324 = vmatprep.subr.mxu0 0.0
        %325 = vmatpush1.msra.mxu0 0.0
        %326 = vmatprep.subr.mxu0 0.0
        %327 = vmatpush1.msra.mxu0 0.0
        %328 = vmatprep.subr.mxu0 0.0
        %329 = vmatpush1.msra.mxu0 0.0
        %330 = vmatprep.subr.mxu0 0.0
        %331 = vmatpush1.msra.mxu0 0.0
        %332 = vmatprep.subr.mxu0 0.0
        %333 = vmatpush1.msra.mxu0 0.0
        %334 = vmatprep.subr.mxu0 0.0
        %335 = vmatpush1.msra.mxu0 0.0
        %336 = vmatprep.subr.mxu0 0.0
        %337 = vmatpush1.msra.mxu0 0.0
        %338 = vmatprep.subr.mxu0 0.0
        %339 = vmatpush1.msra.mxu0 0.0
        %340 = vmatprep.subr.mxu0 0.0
        %341 = vmatpush1.msra.mxu0 0.0
        %342 = vmatprep.mubr.f32.mxu0 0.0
        %343 = vmatmul.mubr.f32.gmra.mrb[0].mxu0 %v253
        %v344 = vpop.f32.mrb[0].mxu0
        %v345 = vadd.f32 %v276, %v344
        %v346 = vpop.f32.mrb[0].mxu0
        %347 = vmatprep.mubr.f32.mxu0 0.0
        %348 = vmatmul.mubr.f32.gmra.mrb[0].mxu0 %v254
        %v349 = vpop.f32.mrb[0].mxu0
        %v350 = vadd.f32 %v276, %v349
        %v351 = vpop.f32.mrb[0].mxu0
        %352 = vdwg.mxu0
        %v353 = vand.u32 2147483647, %v345
        %vm354 = vcmp.le.f32.partialorder %v353, 0.7853982
        %vm355 = vcmp.lt.s32.totalorder %v345, 0
        %v356 = vand.u32 %v345, 2139095040
        %v357 = vshrl.u32 %v356, 23
        %v358 = vsub.s32 %v357, 127
        %v359 = vand.u32 2147483647, %v345
        %v360 = vand.u32 %v359, 8388607
        %v361 = vor.u32 %v360, 8388608
        %v362 = vsub.s32 0, %v361
        %v363 = vadd.s32 %v358, 1
        %vm364 = vcmp.gt.s32.totalorder %v363, 0
        %v365 = vsel %vm364, %v363, 0
        %v366 = vshrl.u32 %v365, 5
        %v367 = vand.u32 %v365, 31
        %v368 = vsub.s32 32, %v367
        %v369 = vshrl.u32 683565275, %v368
        %v370 = vshll.u32 683565275, %v367
        %v371 = vshrl.u32 2475754826, %v368
        %v372 = vor.u32 %v370, %v371
        %v373 = vshll.u32 2475754826, %v367
        %v374 = vshrl.u32 2131351028, %v368
        %v375 = vor.u32 %v373, %v374
        %v376 = vshll.u32 2131351028, %v367
        %v377 = vshrl.u32 2102212464, %v368
        %v378 = vor.u32 %v376, %v377
        %v379 = vshll.u32 2102212464, %v367
        %v380 = vshrl.u32 920167782, %v368
        %v381 = vor.u32 %v379, %v380
        %v382 = vshll.u32 920167782, %v367
        %v383 = vshrl.u32 1326507024, %v368
        %v384 = vor.u32 %v382, %v383
        %vm385 = vcmp.lt.s32.totalorder %v366, 1
        %vm386 = vcmp.lt.s32.totalorder %v366, 2
        %vm387 = vcmp.lt.s32.totalorder %v366, 3
        %vm388 = vcmp.lt.s32.totalorder %v366, 4
        %v389 = vsel %vm385, %v369, %v372
        %v390 = vsel %vm388, %v378, 2102212464
        %v391 = vsel %vm387, %v375, %v390
        %v392 = vsel %vm386, %v389, %v391
        %v393 = vsel %vm385, %v372, %v375
        %v394 = vsel %vm388, %v381, 920167782
        %v395 = vsel %vm387, %v378, %v394
        %v396 = vsel %vm386, %v393, %v395
        %v397 = vsel %vm385, %v375, %v378
        %v398 = vsel %vm388, %v384, 1326507024
        %v399 = vsel %vm387, %v381, %v398
        %v400 = vsel %vm386, %v397, %v399
        %v401 = vshll.u32 %v361, 8
        %v402 = vmul.u32.u64.compose %v401, %v400
        %v403 = vextract.low.u32 %v402
        %v404 = vextract.high.u32 %v402
        %v405 = vmul.u32.u64.compose %v401, %v396
        %v406 = vextract.low.u32 %v405
        %v407 = vextract.high.u32 %v405
        %v408 = vmul.u32 %v401, %v392
        %v409 = vadd.s32 %v404, %v406
        %vm410 = vc.u32 %v404, %v406
        %v411 = vadd.s32 %v407, 1
        %v412 = vsel %vm410, %v411, %v407
        %v413 = vadd.s32 %v408, %v412
        %v414 = vadd.s32 %v413, 536870912
        %v415 = vshrl.u32 %v414, 30
        %v416 = vshll.u32 %v415, 30
        %v417 = vsub.s32 %v413, %v416
        %vm418 = vcmp.lt.s32.totalorder %v417, 0
        %v419 = vsub.s32 0, %v417
        %v420 = vsel %vm418, %v419, %v417
        %v421 = vclz %v420
        %v422 = vsub.s32 %v421, 2
        %vm423 = vcmp.gt.s32.totalorder 0, %v422
        %v424 = vsel %vm423, 0, %v422
        %v425 = vsub.s32 32, %v424
        %v426 = vshll.u32 %v417, %v424
        %v427 = vshrl.u32 %v409, %v425
        %v428 = vor.u32 %v426, %v427
        %v429 = vsub.s32 4294967266, %v424
        %v430 = vadd.s32 %v429, 127
        %v431 = vshll.u32 %v430, 23
        %v432 = vor.u32 4788187, %v431
        %v433 = vand.u32 2147483647, %v432
        %v435 = vcvt.s32.f32 %v428
        %v436 = vmul.f32 %v435, %v433
        %v437 = vxor.u32 %v436, 2147483648
        %v438 = vsel %vm355, %v437, %v436
        %v439 = vsub.s32 4, %v415
        %v440 = vsel %vm355, %v439, %v415
        %v441 = vsel %vm354, %v345, %v438
        %v442 = vsel %vm354, 0, %v440
        %v443 = vcosq.f32.pop %v441
        %v444 = vsinq.f32.pop %v441
        %vm445 = vweird.f32 %v345
        %v446 = vand.u32 %v442, 3
        %vm447 = vcmp.lt.s32.totalorder %v446, 2
        %vm448 = vcmp.eq.s32.totalorder %v446, 0
        %v449 = vxor.u32 %v444, 2147483648
        %v450 = vsel %vm448, %v443, %v449
        %vm451 = vcmp.eq.s32.totalorder %v446, 2
        %v452 = vxor.u32 %v443, 2147483648
        %v453 = vsel %vm451, %v452, %v444
        %v454 = vsel %vm447, %v450, %v453
        %v455 = vsel %vm445, nan, %v454
        %v456 = vand.u32 2147483647, %v350
        %vm457 = vcmp.le.f32.partialorder %v456, 0.7853982
        %vm458 = vcmp.lt.s32.totalorder %v350, 0
        %v459 = vand.u32 %v350, 2139095040
        %v460 = vshrl.u32 %v459, 23
        %v461 = vsub.s32 %v460, 127
        %v462 = vand.u32 2147483647, %v350
        %v463 = vand.u32 %v462, 8388607
        %v464 = vor.u32 %v463, 8388608
        %v465 = vsub.s32 0, %v464
        %v466 = vadd.s32 %v461, 1
        %vm467 = vcmp.gt.s32.totalorder %v466, 0
        %v468 = vsel %vm467, %v466, 0
        %v469 = vshrl.u32 %v468, 5
        %v470 = vand.u32 %v468, 31
        %v471 = vsub.s32 32, %v470
        %v472 = vshrl.u32 683565275, %v471
        %v473 = vshll.u32 683565275, %v470
        %v474 = vshrl.u32 2475754826, %v471
        %v475 = vor.u32 %v473, %v474
        %v476 = vshll.u32 2475754826, %v470
        %v477 = vshrl.u32 2131351028, %v471
        %v478 = vor.u32 %v476, %v477
        %v479 = vshll.u32 2131351028, %v470
        %v480 = vshrl.u32 2102212464, %v471
        %v481 = vor.u32 %v479, %v480
        %v482 = vshll.u32 2102212464, %v470
        %v483 = vshrl.u32 920167782, %v471
        %v484 = vor.u32 %v482, %v483
        %v485 = vshll.u32 920167782, %v470
        %v486 = vshrl.u32 1326507024, %v471
        %v487 = vor.u32 %v485, %v486
        %vm488 = vcmp.lt.s32.totalorder %v469, 1
        %vm489 = vcmp.lt.s32.totalorder %v469, 2
        %vm490 = vcmp.lt.s32.totalorder %v469, 3
        %vm491 = vcmp.lt.s32.totalorder %v469, 4
        %v492 = vsel %vm488, %v472, %v475
        %v493 = vsel %vm491, %v481, 2102212464
        %v494 = vsel %vm490, %v478, %v493
        %v495 = vsel %vm489, %v492, %v494
        %v496 = vsel %vm488, %v475, %v478
        %v497 = vsel %vm491, %v484, 920167782
        %v498 = vsel %vm490, %v481, %v497
        %v499 = vsel %vm489, %v496, %v498
        %v500 = vsel %vm488, %v478, %v481
        %v501 = vsel %vm491, %v487, 1326507024
        %v502 = vsel %vm490, %v484, %v501
        %v503 = vsel %vm489, %v500, %v502
        %v504 = vshll.u32 %v464, 8
        %v505 = vmul.u32.u64.compose %v504, %v503
        %v506 = vextract.low.u32 %v505
        %v507 = vextract.high.u32 %v505
        %v508 = vmul.u32.u64.compose %v504, %v499
        %v509 = vextract.low.u32 %v508
        %v510 = vextract.high.u32 %v508
        %v511 = vmul.u32 %v504, %v495
        %v512 = vadd.s32 %v507, %v509
        %vm513 = vc.u32 %v507, %v509
        %v514 = vadd.s32 %v510, 1
        %v515 = vsel %vm513, %v514, %v510
        %v516 = vadd.s32 %v511, %v515
        %v517 = vadd.s32 %v516, 536870912
        %v518 = vshrl.u32 %v517, 30
        %v519 = vshll.u32 %v518, 30
        %v520 = vsub.s32 %v516, %v519
        %vm521 = vcmp.lt.s32.totalorder %v520, 0
        %v522 = vsub.s32 0, %v520
        %v523 = vsel %vm521, %v522, %v520
        %v524 = vclz %v523
        %v525 = vsub.s32 %v524, 2
        %vm526 = vcmp.gt.s32.totalorder 0, %v525
        %v527 = vsel %vm526, 0, %v525
        %v528 = vsub.s32 32, %v527
        %v529 = vshll.u32 %v520, %v527
        %v530 = vshrl.u32 %v512, %v528
        %v531 = vor.u32 %v529, %v530
        %v532 = vsub.s32 4294967266, %v527
        %v533 = vadd.s32 %v532, 127
        %v534 = vshll.u32 %v533, 23
        %v535 = vor.u32 4788187, %v534
        %v536 = vand.u32 2147483647, %v535
        %v538 = vcvt.s32.f32 %v531
        %v539 = vmul.f32 %v538, %v536
        %v540 = vxor.u32 %v539, 2147483648
        %v541 = vsel %vm458, %v540, %v539
        %v542 = vsub.s32 4, %v518
        %v543 = vsel %vm458, %v542, %v518
        %v544 = vsel %vm457, %v350, %v541
        %v545 = vsel %vm457, 0, %v543
        %v546 = vcosq.f32.pop %v544
        %v547 = vsinq.f32.pop %v544
        %vm548 = vweird.f32 %v350
        %v549 = vand.u32 %v545, 3
        %vm550 = vcmp.lt.s32.totalorder %v549, 2
        %vm551 = vcmp.eq.s32.totalorder %v549, 0
        %v552 = vxor.u32 %v547, 2147483648
        %v553 = vsel %vm551, %v546, %v552
        %vm554 = vcmp.eq.s32.totalorder %v549, 2
        %v555 = vxor.u32 %v546, 2147483648
        %v556 = vsel %vm554, %v555, %v547
        %v557 = vsel %vm550, %v553, %v556
        %v558 = vsel %vm548, nan, %v557
        %v559 = vsub.f32 %v455, 1.0
        %v560 = vsub.f32 %v558, 1.0
        %v561 = vld [vmem:[%s5] sm:$0xff]
        %v562 = vld [vmem:[%s5 + $0x8] sm:$0xff]
        %v563 = vlaneseq
        %v564 = vshrl.u32 %v563, 7
        %v565 = vsub.s32 0, %v564
        %v566 = vrot.slane %v561, %v565
        %568 = vset.pattern.permute.xlu0 0
        %569 = vperm.xlu0 %568, %v559
        %v570 = vpop.permute.xlu0 %569
        %573 = vset.pattern.permute.xlu0 0
        %574 = vperm.xlu0 %573, %v560
        %v575 = vpop.permute.xlu0 %574
        %v577 = vmul.f32 %v566, %v570
        %v578 = vmul.f32 %v566, %v575
        %v579 = vadd.f32 %v577, 1.0
        %v580 = vadd.f32 %v578, 1.0
        %v581 = vlaneseq
        %v582 = vshrl.u32 %v581, 7
        %v583 = vsub.s32 1, %v582
        %v584 = vrot.slane %v561, %v583
        %585 = vset.pattern.permute.xlu0 1
        %586 = vperm.xlu0 %585, %v559
        %v587 = vpop.permute.xlu0 %586
        %589 = vset.pattern.permute.xlu0 1
        %590 = vperm.xlu0 %589, %v560
        %v591 = vpop.permute.xlu0 %590
        %v593 = vmul.f32 %v584, %v587
        %v594 = vmul.f32 %v584, %v591
        %v595 = vadd.f32 %v593, 1.0
        %v596 = vadd.f32 %v594, 1.0
        %v597 = vmul.f32 %v579, %v595
        %v598 = vmul.f32 %v580, %v596
        %v599 = vlaneseq
        %v600 = vshrl.u32 %v599, 7
        %v601 = vsub.s32 2, %v600
        %v602 = vrot.slane %v561, %v601
        %603 = vset.pattern.permute.xlu0 2
        %604 = vperm.xlu0 %603, %v559
        %v605 = vpop.permute.xlu0 %604
        %607 = vset.pattern.permute.xlu0 2
        %608 = vperm.xlu0 %607, %v560
        %v609 = vpop.permute.xlu0 %608
        %v611 = vmul.f32 %v602, %v605
        %v612 = vmul.f32 %v602, %v609
        %v613 = vadd.f32 %v611, 1.0
        %v614 = vadd.f32 %v612, 1.0
        %v615 = vmul.f32 %v597, %v613
        %v616 = vmul.f32 %v598, %v614
        %v617 = vlaneseq
        %v618 = vshrl.u32 %v617, 7
        %v619 = vsub.s32 3, %v618
        %v620 = vrot.slane %v561, %v619
        %621 = vset.pattern.permute.xlu0 3
        %622 = vperm.xlu0 %621, %v559
        %v623 = vpop.permute.xlu0 %622
        %625 = vset.pattern.permute.xlu0 3
        %626 = vperm.xlu0 %625, %v560
        %v627 = vpop.permute.xlu0 %626
        %v629 = vmul.f32 %v620, %v623
        %v630 = vmul.f32 %v620, %v627
        %v631 = vadd.f32 %v629, 1.0
        %v632 = vadd.f32 %v630, 1.0
        %v633 = vmul.f32 %v615, %v631
        %v634 = vmul.f32 %v616, %v632
        %v635 = vlaneseq
        %v636 = vshrl.u32 %v635, 7
        %v637 = vsub.s32 4, %v636
        %v638 = vrot.slane %v561, %v637
        %639 = vset.pattern.permute.xlu0 4
        %640 = vperm.xlu0 %639, %v559
        %v641 = vpop.permute.xlu0 %640
        %643 = vset.pattern.permute.xlu0 4
        %644 = vperm.xlu0 %643, %v560
        %v645 = vpop.permute.xlu0 %644
        %v647 = vmul.f32 %v638, %v641
        %v648 = vmul.f32 %v638, %v645
        %v649 = vadd.f32 %v647, 1.0
        %v650 = vadd.f32 %v648, 1.0
        %v651 = vmul.f32 %v633, %v649
        %v652 = vmul.f32 %v634, %v650
        %v653 = vlaneseq
        %v654 = vshrl.u32 %v653, 7
        %v655 = vsub.s32 5, %v654
        %v656 = vrot.slane %v561, %v655
        %657 = vset.pattern.permute.xlu0 5
        %658 = vperm.xlu0 %657, %v559
        %v659 = vpop.permute.xlu0 %658
        %661 = vset.pattern.permute.xlu0 5
        %662 = vperm.xlu0 %661, %v560
        %v663 = vpop.permute.xlu0 %662
        %v665 = vmul.f32 %v656, %v659
        %v666 = vmul.f32 %v656, %v663
        %v667 = vadd.f32 %v665, 1.0
        %v668 = vadd.f32 %v666, 1.0
        %v669 = vmul.f32 %v651, %v667
        %v670 = vmul.f32 %v652, %v668
        %v671 = vlaneseq
        %v672 = vshrl.u32 %v671, 7
        %v673 = vsub.s32 6, %v672
        %v674 = vrot.slane %v561, %v673
        %675 = vset.pattern.permute.xlu0 6
        %676 = vperm.xlu0 %675, %v559
        %v677 = vpop.permute.xlu0 %676
        %679 = vset.pattern.permute.xlu0 6
        %680 = vperm.xlu0 %679, %v560
        %v681 = vpop.permute.xlu0 %680
        %v683 = vmul.f32 %v674, %v677
        %v684 = vmul.f32 %v674, %v681
        %v685 = vadd.f32 %v683, 1.0
        %v686 = vadd.f32 %v684, 1.0
        %v687 = vmul.f32 %v669, %v685
        %v688 = vmul.f32 %v670, %v686
        %v689 = vlaneseq
        %v690 = vshrl.u32 %v689, 7
        %v691 = vsub.s32 7, %v690
        %v692 = vrot.slane %v561, %v691
        %693 = vset.pattern.permute.xlu0 7
        %694 = vperm.xlu0 %693, %v559
        %v695 = vpop.permute.xlu0 %694
        %697 = vset.pattern.permute.xlu0 7
        %698 = vperm.xlu0 %697, %v560
        %v699 = vpop.permute.xlu0 %698
        %v701 = vmul.f32 %v692, %v695
        %v702 = vmul.f32 %v692, %v699
        %v703 = vadd.f32 %v701, 1.0
        %v704 = vadd.f32 %v702, 1.0
        %v705 = vmul.f32 %v687, %v703
        %v706 = vmul.f32 %v688, %v704
        %v707 = vlaneseq
        %v708 = vshrl.u32 %v707, 7
        %v709 = vsub.s32 0, %v708
        %v710 = vrot.slane %v562, %v709
        %711 = vset.pattern.permute.xlu0 8
        %712 = vperm.xlu0 %711, %v559
        %v713 = vpop.permute.xlu0 %712
        %715 = vset.pattern.permute.xlu0 8
        %716 = vperm.xlu0 %715, %v560
        %v717 = vpop.permute.xlu0 %716
        %v719 = vmul.f32 %v710, %v713
        %v720 = vmul.f32 %v710, %v717
        %v721 = vadd.f32 %v719, 1.0
        %v722 = vadd.f32 %v720, 1.0
        %v723 = vmul.f32 %v705, %v721
        %v724 = vmul.f32 %v706, %v722
        %v725 = vlaneseq
        %v726 = vshrl.u32 %v725, 7
        %v727 = vsub.s32 1, %v726
        %v728 = vrot.slane %v562, %v727
        %729 = vset.pattern.permute.xlu0 9
        %730 = vperm.xlu0 %729, %v559
        %v731 = vpop.permute.xlu0 %730
        %733 = vset.pattern.permute.xlu0 9
        %734 = vperm.xlu0 %733, %v560
        %v735 = vpop.permute.xlu0 %734
        %v737 = vmul.f32 %v728, %v731
        %v738 = vmul.f32 %v728, %v735
        %v739 = vadd.f32 %v737, 1.0
        %v740 = vadd.f32 %v738, 1.0
        %v741 = vmul.f32 %v723, %v739
        %v742 = vmul.f32 %v724, %v740
        %v743 = vlaneseq
        %v744 = vshrl.u32 %v743, 7
        %v745 = vsub.s32 2, %v744
        %v746 = vrot.slane %v562, %v745
        %747 = vset.pattern.permute.xlu0 10
        %748 = vperm.xlu0 %747, %v559
        %v749 = vpop.permute.xlu0 %748
        %751 = vset.pattern.permute.xlu0 10
        %752 = vperm.xlu0 %751, %v560
        %v753 = vpop.permute.xlu0 %752
        %v755 = vmul.f32 %v746, %v749
        %v756 = vmul.f32 %v746, %v753
        %v757 = vadd.f32 %v755, 1.0
        %v758 = vadd.f32 %v756, 1.0
        %v759 = vmul.f32 %v741, %v757
        %v760 = vmul.f32 %v742, %v758
        %v761 = vlaneseq
        %v762 = vshrl.u32 %v761, 7
        %v763 = vsub.s32 3, %v762
        %v764 = vrot.slane %v562, %v763
        %765 = vset.pattern.permute.xlu0 11
        %766 = vperm.xlu0 %765, %v559
        %v767 = vpop.permute.xlu0 %766
        %769 = vset.pattern.permute.xlu0 11
        %770 = vperm.xlu0 %769, %v560
        %v771 = vpop.permute.xlu0 %770
        %v773 = vmul.f32 %v764, %v767
        %v774 = vmul.f32 %v764, %v771
        %v775 = vadd.f32 %v773, 1.0
        %v776 = vadd.f32 %v774, 1.0
        %v777 = vmul.f32 %v759, %v775
        %v778 = vmul.f32 %v760, %v776
        %v779 = vlaneseq
        %v780 = vshrl.u32 %v779, 7
        %v781 = vsub.s32 4, %v780
        %v782 = vrot.slane %v562, %v781
        %783 = vset.pattern.permute.xlu0 12
        %784 = vperm.xlu0 %783, %v559
        %v785 = vpop.permute.xlu0 %784
        %787 = vset.pattern.permute.xlu0 12
        %788 = vperm.xlu0 %787, %v560
        %v789 = vpop.permute.xlu0 %788
        %v791 = vmul.f32 %v782, %v785
        %v792 = vmul.f32 %v782, %v789
        %v793 = vadd.f32 %v791, 1.0
        %v794 = vadd.f32 %v792, 1.0
        %v795 = vmul.f32 %v777, %v793
        %v796 = vmul.f32 %v778, %v794
        %v797 = vlaneseq
        %v798 = vshrl.u32 %v797, 7
        %v799 = vsub.s32 5, %v798
        %v800 = vrot.slane %v562, %v799
        %801 = vset.pattern.permute.xlu0 13
        %802 = vperm.xlu0 %801, %v559
        %v803 = vpop.permute.xlu0 %802
        %805 = vset.pattern.permute.xlu0 13
        %806 = vperm.xlu0 %805, %v560
        %v807 = vpop.permute.xlu0 %806
        %v809 = vmul.f32 %v800, %v803
        %v810 = vmul.f32 %v800, %v807
        %v811 = vadd.f32 %v809, 1.0
        %v812 = vadd.f32 %v810, 1.0
        %v813 = vmul.f32 %v795, %v811
        %v814 = vmul.f32 %v796, %v812
        %v815 = vlaneseq
        %v816 = vshrl.u32 %v815, 7
        %v817 = vsub.s32 6, %v816
        %v818 = vrot.slane %v562, %v817
        %819 = vset.pattern.permute.xlu0 14
        %820 = vperm.xlu0 %819, %v559
        %v821 = vpop.permute.xlu0 %820
        %823 = vset.pattern.permute.xlu0 14
        %824 = vperm.xlu0 %823, %v560
        %v825 = vpop.permute.xlu0 %824
        %v827 = vmul.f32 %v818, %v821
        %v828 = vmul.f32 %v818, %v825
        %v829 = vadd.f32 %v827, 1.0
        %v830 = vadd.f32 %v828, 1.0
        %v831 = vmul.f32 %v813, %v829
        %v832 = vmul.f32 %v814, %v830
        %v833 = vlaneseq
        %v834 = vshrl.u32 %v833, 7
        %v835 = vsub.s32 7, %v834
        %v836 = vrot.slane %v562, %v835
        %837 = vset.pattern.permute.xlu0 15
        %838 = vperm.xlu0 %837, %v559
        %v839 = vpop.permute.xlu0 %838
        %841 = vset.pattern.permute.xlu0 15
        %842 = vperm.xlu0 %841, %v560
        %v843 = vpop.permute.xlu0 %842
        %v845 = vmul.f32 %v836, %v839
        %v846 = vmul.f32 %v836, %v843
        %v847 = vadd.f32 %v845, 1.0
        %v848 = vadd.f32 %v846, 1.0
        %v849 = vmul.f32 %v831, %v847
        %v850 = vmul.f32 %v832, %v848
        %v851 = vld [vmem:[%s3] sm:$0xff]
        %v852 = vld [vmem:[%s3 + $0x8] sm:$0xff]
        %v853 = vld [vmem:[%s4] sm:$0x1]
        %v855 = vlaneseq
        %v856 = vshrl.u32 %v855, 7
        %v857 = vsub.s32 0, %v856
        %v858 = vrot.slane %v853, %v857
        %vm860 = vcmask 130048
        %v862 = vsel %vm860, %v849, 0
        %v865 = vsel %vm860, %v850, 0
        %867 = vmatprep.subr.mxu0 0.0
        %868 = vmatpush1.msra.mxu0 %v851
        %869 = vmatprep.subr.mxu0 0.0
        %870 = vmatpush1.msra.mxu0 %v852
        %871 = vmatprep.subr.mxu0 0.0
        %872 = vmatpush1.msra.mxu0 0.0
        %873 = vmatprep.subr.mxu0 0.0
        %874 = vmatpush1.msra.mxu0 0.0
        %875 = vmatprep.subr.mxu0 0.0
        %876 = vmatpush1.msra.mxu0 0.0
        %877 = vmatprep.subr.mxu0 0.0
        %878 = vmatpush1.msra.mxu0 0.0
        %879 = vmatprep.subr.mxu0 0.0
        %880 = vmatpush1.msra.mxu0 0.0
        %881 = vmatprep.subr.mxu0 0.0
        %882 = vmatpush1.msra.mxu0 0.0
        %883 = vmatprep.subr.mxu0 0.0
        %884 = vmatpush1.msra.mxu0 0.0
        %885 = vmatprep.subr.mxu0 0.0
        %886 = vmatpush1.msra.mxu0 0.0
        %887 = vmatprep.subr.mxu0 0.0
        %888 = vmatpush1.msra.mxu0 0.0
        %889 = vmatprep.subr.mxu0 0.0
        %890 = vmatpush1.msra.mxu0 0.0
        %891 = vmatprep.subr.mxu0 0.0
        %892 = vmatpush1.msra.mxu0 0.0
        %893 = vmatprep.subr.mxu0 0.0
        %894 = vmatpush1.msra.mxu0 0.0
        %895 = vmatprep.subr.mxu0 0.0
        %896 = vmatpush1.msra.mxu0 0.0
        %897 = vmatprep.subr.mxu0 0.0
        %898 = vmatpush1.msra.mxu0 0.0
        %899 = vmatprep.subr.mxu0 0.0
        %900 = vmatpush1.msra.mxu0 0.0
        %901 = vmatprep.subr.mxu0 0.0
        %902 = vmatpush1.msra.mxu0 0.0
        %903 = vmatprep.subr.mxu0 0.0
        %904 = vmatpush1.msra.mxu0 0.0
        %905 = vmatprep.subr.mxu0 0.0
        %906 = vmatpush1.msra.mxu0 0.0
        %907 = vmatprep.subr.mxu0 0.0
        %908 = vmatpush1.msra.mxu0 0.0
        %909 = vmatprep.subr.mxu0 0.0
        %910 = vmatpush1.msra.mxu0 0.0
        %911 = vmatprep.subr.mxu0 0.0
        %912 = vmatpush1.msra.mxu0 0.0
        %913 = vmatprep.subr.mxu0 0.0
        %914 = vmatpush1.msra.mxu0 0.0
        %915 = vmatprep.subr.mxu0 0.0
        %916 = vmatpush1.msra.mxu0 0.0
        %917 = vmatprep.subr.mxu0 0.0
        %918 = vmatpush1.msra.mxu0 0.0
        %919 = vmatprep.subr.mxu0 0.0
        %920 = vmatpush1.msra.mxu0 0.0
        %921 = vmatprep.subr.mxu0 0.0
        %922 = vmatpush1.msra.mxu0 0.0
        %923 = vmatprep.subr.mxu0 0.0
        %924 = vmatpush1.msra.mxu0 0.0
        %925 = vmatprep.subr.mxu0 0.0
        %926 = vmatpush1.msra.mxu0 0.0
        %927 = vmatprep.subr.mxu0 0.0
        %928 = vmatpush1.msra.mxu0 0.0
        %929 = vmatprep.subr.mxu0 0.0
        %930 = vmatpush1.msra.mxu0 0.0
        %931 = vmatprep.mubr.f32.mxu0 0.0
        %932 = vmatmul.mubr.f32.gmra.mrb[0].mxu0 %v862
        %v933 = vpop.f32.mrb[0].mxu0
        %v934 = vadd.f32 %v858, %v933
        %v935 = vpop.f32.mrb[0].mxu0
        %936 = vmatprep.mubr.f32.mxu0 0.0
        %937 = vmatmul.mubr.f32.gmra.mrb[0].mxu0 %v865
        %v938 = vpop.f32.mrb[0].mxu0
        %v939 = vadd.f32 %v858, %v938
        %v940 = vpop.f32.mrb[0].mxu0
        %941 = vdwg.mxu0
        %942 = vst [vmem:[%s245] sm:$0xff] %v934
        %943 = vst [vmem:[%s245 + $0x8] sm:$0xff] %v939
        %s944 = sand.u32 %s159, 1
        %s945 = scalar_lea.sflag [#allocation3], %s944
        %s946 = sand.u32 %s159, 1
        %s947 = smul.addr %s946, 16
        %s948 = scalar_lea.vmem [#allocation2], %s947
        // Predicated region
        $region45: #{tpu_custom_call.1} parent=43 // pred_check
          %p949 = pneg %p169
        $region46: #{tpu_custom_call.1} parent=43 // pred_check_branch
          %951 = sbr.rel (%p949) target = $region48
        $region47: #{tpu_custom_call.1} parent=43 // pred_region
          %s952 = smul.u32 2, %s20
          %s954 = ssub.s32 256, 256
          %955 = vsyncadd %s945, %s954
          %s956 = smul.addr %s952, 128
          %s957 = scalar_lea.hbm %s6, %s956
          %s958 = sshll.u32 %s948, 4
          %s959 = int_to_ptr.vmem [resolvable:$true] %s958
          %964 = dma.vmem_to_hbm [thread:$0]  %s959, 256, %s957, %s945, 128, 128, 8
        $region48: #{tpu_custom_call.1} parent=43 // pred_fallthru
          _
      $region44: #{tpu_custom_call.1} parent=5 // pred_fallthru
        _
      %p965 = scmp.le.s32.totalorder 2, %s15
      // Predicated region
      $region49: #{tpu_custom_call.1} parent=5 // pred_check
        %p966 = pneg %p965
      $region50: #{tpu_custom_call.1} parent=5 // pred_check_branch
        %968 = sbr.rel (%p966) target = $region52
      $region51: #{tpu_custom_call.1} parent=5 // pred_region
        %s969 = ssub.s32 %s15, 2
        // Predicated region
        $region53: #{tpu_custom_call.1} parent=51 // pred_check
          %p970 = pneg %p175
        $region54: #{tpu_custom_call.1} parent=51 // pred_check_branch
          %972 = sbr.rel (%p970) target = $region56
        $region55: #{tpu_custom_call.1} parent=51 // pred_region
          %s973 = sand.u32 %s160, 1
          %s974 = scalar_lea.sflag [#allocation3], %s973
          %s975 = sand.u32 %s160, 1
          %s976 = smul.addr %s975, 16
          %s977 = scalar_lea.vmem [#allocation2], %s976
          %978 = dma.done %s974, 256
        $region56: #{tpu_custom_call.1} parent=51 // pred_fallthru
          _
      $region52: #{tpu_custom_call.1} parent=5 // pred_fallthru
        _
    $region6: #{tpu_custom_call.1} parent=1 // loop_footer
      %s19 = sadd.s32 1, %s15
    $region7: #{tpu_custom_call.1} parent=1 // loop_footer_branch
      %14 = sbr.rel target = $region3
    $region8: #{tpu_custom_call.1} parent=1 // loop_exit
      _
    %979 = vsyncpa [#allocation3], 1
    %s980 = scalar_lea.sflag [#allocation3], 1
    %981 = vsyncpa %s980, 1

</llo_original>
